<compile_context>
chip_gen: v5e
topology: v5e:2x2
jax: 0.10.0
libtpu: 0.0.40
codegen_flags: <defaults>
</compile_context>

<pallas_src>
import math

import jax
import jax.numpy as jnp
from jax.experimental import pallas as pl
from jax.experimental.pallas import tpu as pltpu

_SQRT_2_OVER_PI = math.sqrt(2.0 / math.pi)
_CUBIC_COEF = 0.0044715  # exact constant from the PyTorch module

_TILE_BYTES = 4 * 1024 * 1024  # per-buffer tile target (~4 MiB)


def _gelu_kernel(x_ref, o_ref):
    x = x_ref[...].astype(jnp.float32)
    x2 = x * x
    inner = jnp.float32(_SQRT_2_OVER_PI) * (
        x + jnp.float32(_CUBIC_COEF) * x2 * x
    )
    out = jnp.float32(0.5) * x * (jnp.float32(1.0) + jnp.tanh(inner))
    o_ref[...] = out.astype(o_ref.dtype)


def _round_up(a, m):
    return ((a + m - 1) // m) * m


def _sublane_multiple(dtype):
    # 8 sublanes of 32-bit; sub-32-bit dtypes pack along sublanes.
    return max(8, 32 // jnp.dtype(dtype).itemsize)


def _pick_block_rows(rows, cols, dtype):
    sub = _sublane_multiple(dtype)
    itemsize = jnp.dtype(dtype).itemsize
    bytes_per_row = max(1, cols * itemsize)
    budget_rows = max(sub, (_TILE_BYTES // bytes_per_row) // sub * sub)
    block_rows = min(budget_rows, _round_up(rows, sub))
    # v7x megacore: guarantee >= 2 programs on the parallel axis when the
    # input is splittable, otherwise one TensorCore sits idle.
    if pl.cdiv(rows, block_rows) < 2 and rows > sub:
        block_rows = _round_up(pl.cdiv(rows, 2), sub)
    return block_rows


def _gelu_2d(x2d):
    rows, cols = x2d.shape
    block_rows = _pick_block_rows(rows, cols, x2d.dtype)
    grid = (pl.cdiv(rows, block_rows),)  # partial final block handled by Pallas
    return pl.pallas_call(
        _gelu_kernel,
        out_shape=jax.ShapeDtypeStruct((rows, cols), x2d.dtype),
        grid=grid,
        in_specs=[pl.BlockSpec((block_rows, cols), lambda i: (i, 0))],
        out_specs=pl.BlockSpec((block_rows, cols), lambda i: (i, 0)),
        compiler_params=pltpu.CompilerParams(
            dimension_semantics=("parallel",),
            # Actual usage is ~16 MiB (double-buffered in+out at ~4 MiB tiles);
            # 32 MiB is safe on v5e/v6e (128 MiB) and v7x (64 MiB) alike.
            vmem_limit_bytes=32 * 1024 * 1024,
        ),
    )(x2d)


@jax.jit
def gelu(x):
    """Elementwise tanh-GELU (module's exact formula). Works on any shape."""
    orig_shape = x.shape
    n = x.size
    if n == 0:
        return x

    # Fast path: last dim already lane-aligned -> zero-copy reshape only.
    if len(orig_shape) >= 1 and orig_shape[-1] > 0 and orig_shape[-1] % 128 == 0:
        cols = orig_shape[-1]
        out2d = _gelu_2d(x.reshape(n // cols, cols))
        return out2d.reshape(orig_shape)

    # Ragged path: flatten; pad only up to a multiple of the lane width.
    cols = 1024 if n >= 8 * 1024 else 128
    rows = pl.cdiv(n, cols)
    n_padded = rows * cols
    flat = x.reshape(-1)
    if n_padded != n:
        flat = jnp.pad(flat, (0, n_padded - n))
    out2d = _gelu_2d(flat.reshape(rows, cols))
    out_flat = out2d.reshape(-1)
    if n_padded != n:
        out_flat = out_flat[:n]
    return out_flat.reshape(orig_shape)


def _reference(x):
    xf = x.astype(jnp.float32)
    out = (
        0.5
        * xf
        * (1.0 + jnp.tanh(_SQRT_2_OVER_PI * (xf + _CUBIC_COEF * xf**3)))
    )
    return out.astype(x.dtype)


if __name__ == "__main__":
    key = jax.random.PRNGKey(0)

    # Small shapes consistent with the attention module's (batch, seq, hidden).
    batch, seq_len, d_model = 2, 8, 32
    x = jax.random.normal(key, (batch, seq_len, d_model), dtype=jnp.float32)
    out = jax.block_until_ready(gelu(x))
    ref = _reference(x)
    assert out.shape == (batch, seq_len, d_model)
    assert jnp.allclose(out, ref, atol=1e-5, rtol=1e-5), "mismatch (ragged path)"

    # Also exercise the lane-aligned zero-copy fast path.
    x2 = jax.random.normal(jax.random.PRNGKey(1), (2, 8, 128), dtype=jnp.float32)
    out2 = jax.block_until_ready(gelu(x2))
    assert jnp.allclose(out2, _reference(x2), atol=1e-5, rtol=1e-5), (
        "mismatch (fast path)"
    )

    print("KERNEL_OK")
</pallas_src>

<mosaic_0001>
module attributes {stable_mosaic.version = 11 : i64} {
  func.func @_gelu_kernel(%arg0: i32, %arg1: memref<8x128xf32, #tpu.memory_space<vmem>>, %arg2: memref<8x128xf32, #tpu.memory_space<vmem>>) attributes {dimension_semantics = [#tpu.dimension_semantics<parallel>], iteration_bounds = array<i64: 1>, scalar_prefetch = 0 : i64, scratch_operands = 0 : i64, tpu.core_type = #tpu.core_type<tc>, window_params = [{transform_indices = @transform_0, window_bounds = array<i64: 8, 128>}, {transform_indices = @transform_1, window_bounds = array<i64: 8, 128>}]} {
    %c0 = arith.constant 0 : index
    %c0_0 = arith.constant 0 : index
    %0 = vector.load %arg1[%c0, %c0_0] : memref<8x128xf32, #tpu.memory_space<vmem>>, vector<8x128xf32>
    %1 = arith.mulf %0, %0 : vector<8x128xf32>
    %cst = arith.constant 4.471500e-03 : f32
    %2 = vector.broadcast %cst : f32 to vector<8x128xf32>
    %3 = arith.mulf %2, %1 : vector<8x128xf32>
    %4 = arith.mulf %3, %0 : vector<8x128xf32>
    %5 = arith.addf %0, %4 : vector<8x128xf32>
    %cst_1 = arith.constant 0.797884583 : f32
    %6 = vector.broadcast %cst_1 : f32 to vector<8x128xf32>
    %7 = arith.mulf %6, %5 : vector<8x128xf32>
    %cst_2 = arith.constant 5.000000e-01 : f32
    %8 = vector.broadcast %cst_2 : f32 to vector<8x128xf32>
    %9 = arith.mulf %8, %0 : vector<8x128xf32>
    %10 = math.tanh %7 : vector<8x128xf32>
    %cst_3 = arith.constant 1.000000e+00 : f32
    %11 = vector.broadcast %cst_3 : f32 to vector<8x128xf32>
    %12 = arith.addf %11, %10 : vector<8x128xf32>
    %13 = arith.mulf %9, %12 : vector<8x128xf32>
    %c0_4 = arith.constant 0 : index
    %c0_5 = arith.constant 0 : index
    %14 = vector.load %arg2[%c0_4, %c0_5] : memref<8x128xf32, #tpu.memory_space<vmem>>, vector<8x128xf32>
    tpu.vector_store %arg2[%c0_4, %c0_5], %13 {strides = array<i32>} : memref<8x128xf32, #tpu.memory_space<vmem>>, vector<8x128xf32>,
    return
  }
  func.func @transform_0(%arg0: i32) -> (i32, i32) {
    %c0_i32 = arith.constant 0 : i32
    %c0_i32_0 = arith.constant 0 : i32
    return %arg0, %c0_i32 : i32, i32
  }
  func.func @transform_1(%arg0: i32) -> (i32, i32) {
    %c0_i32 = arith.constant 0 : i32
    %c0_i32_0 = arith.constant 0 : i32
    return %arg0, %c0_i32 : i32, i32
  }
}

</mosaic_0001>

<llo_original>
// kernel: gelu.1
$region0: #{gelu.1}
  #allocation0 [shape = 'u32[]', space=smem, size = 0x4, offset = 0x4, fixed_abs, tag = 'smem constant byte address 0x4 - core index']
  #allocation1 [shape = 'u32[72,128]{1,0:T(1,128)}', space=vmem, size = 0x9000, scoped, tag = 'internal scratch']
  %s0 = inlined_call_operand.vmem [shape: f32[4,128], index: 0, kind: input, shape index: {}]
  %s1 = inlined_call_operand.vmem [shape: f32[4,128], index: 1, kind: output, shape index: {}]
  %s2 = sld [smem:[#allocation0]]
  $region44: #{gelu.1} parent=0
    _
  %s4 = ssub.s32 1, %s2
  %s5 = scalar_select 0, %s4, %s2
  $region1: #{gelu.1} parent=0
    #allocation2 [shape = 'u8[4096]{0}', space=vmem, size = 0x1000, scoped, tag = 'output window, operand 0, single buffered']
    // Predicated region
    $region2: #{gelu.1} parent=1 // pred_check
      _
    $region3: #{gelu.1} parent=1 // pred_check_branch
      %7 = sbr.rel (0) target = $region5
    $region4: #{gelu.1} parent=1 // pred_region
      _
    $region5: #{gelu.1} parent=1 // pred_fallthru
      _
    %v8 = vld [vmem:[%s0] sm:$0xff]
    %v9 = vmul.f32 %v8, %v8
    %v10 = vmul.f32 %v9, 0.0044715
    %v11 = vmul.f32 %v10, %v8
    %v12 = vadd.f32 %v8, %v11
    %v13 = vmul.f32 %v12, 0.7978846
    %v14 = vmul.f32 %v8, 0.5
    %v15 = vtanh.pop %v13
    %v16 = vadd.f32 %v15, 1.0
    %v17 = vmul.f32 %v14, %v16
    %18 = vst [vmem:[#allocation2] sm:$0xff] %v17
    // Predicated region
    $region6: #{gelu.1} parent=1 // pred_check
      _
    $region7: #{gelu.1} parent=1 // pred_check_branch
      %20 = sbr.rel (0) target = $region9
    $region8: #{gelu.1} parent=1 // pred_region
      // Predicated region
      $region10: #{gelu.1} parent=8 // pred_check
        _
      $region11: #{gelu.1} parent=8 // pred_check_branch
        %22 = sbr.rel (0) target = $region13
      $region12: #{gelu.1} parent=8 // pred_region
        // Predicated region
        $region14: #{gelu.1} parent=12 // pred_check
          _
        $region15: #{gelu.1} parent=12 // pred_check_branch
          %24 = sbr.rel target = $region17
        $region16: #{gelu.1} parent=12 // pred_region
          // Predicated region
          $region29: #{gelu.1} parent=16 // pred_check
            _
          $region30: #{gelu.1} parent=16 // pred_check_branch
            %40 = sbr.rel (0) target = $region32
          $region31: #{gelu.1} parent=16 // pred_region
            %s42 = ssub.s32 16, 1
            loop: start=0, step=1, limit=1
            $region33: #{gelu.1} parent=31 // loop_pre_header
              _
            $region34: #{gelu.1} parent=31 // loop_header
              %s44 = sphi 0, %s48
              %p45 = scmp.ge.s32.totalorder %s44, 1
              %s49 = sphi [#allocation2], [#allocation2]
              %s50 = sphi %s1, %s1
            $region35: #{gelu.1} parent=31 // loop_header_branch
              %47 = sbr.rel (%p45) target = $region39
            $region36: #{gelu.1} parent=31 // loop_body
              %v51 = vld [vmem:[%s49] sm:%s42]
              %52 = vst [vmem:[%s50] sm:%s42] %v51
            $region37: #{gelu.1} parent=31 // loop_footer
              %s48 = sadd.s32 1, %s44
            $region38: #{gelu.1} parent=31 // loop_footer_branch
              %43 = sbr.rel target = $region34
            $region39: #{gelu.1} parent=31 // loop_exit
              _
          $region32: #{gelu.1} parent=16 // pred_fallthru
            _
        $region17: #{gelu.1} parent=12 // pred_fallthru
          _
        // Predicated region
        $region18: #{gelu.1} parent=12 // pred_check
          _
        $region19: #{gelu.1} parent=12 // pred_check_branch
          %26 = sbr.rel (0) target = $region21
        $region20: #{gelu.1} parent=12 // pred_region
          %s28 = ssub.s32 16, 1
          loop: start=0, step=1, limit=1
          $region22: #{gelu.1} parent=20 // loop_pre_header
            _
          $region23: #{gelu.1} parent=20 // loop_header
            %s30 = sphi 0, %s34
            %p31 = scmp.ge.s32.totalorder %s30, 1
            %s35 = sphi [#allocation2], [#allocation2]
            %s36 = sphi %s1, %s1
          $region24: #{gelu.1} parent=20 // loop_header_branch
            %33 = sbr.rel (%p31) target = $region28
          $region25: #{gelu.1} parent=20 // loop_body
            %v37 = vld [vmem:[%s35] sm:%s28]
            %38 = vst [vmem:[%s36] sm:%s28] %v37
          $region26: #{gelu.1} parent=20 // loop_footer
            %s34 = sadd.s32 1, %s30
          $region27: #{gelu.1} parent=20 // loop_footer_branch
            %29 = sbr.rel target = $region23
          $region28: #{gelu.1} parent=20 // loop_exit
            _
        $region21: #{gelu.1} parent=12 // pred_fallthru
          _
      $region13: #{gelu.1} parent=8 // pred_fallthru
        _
      %53 = vnop
    $region9: #{gelu.1} parent=1 // pred_fallthru
      _
    // Predicated region
    $region40: #{gelu.1} parent=1 // pred_check
      _
    $region41: #{gelu.1} parent=1 // pred_check_branch
      %55 = sbr.rel (0) target = $region43
    $region42: #{gelu.1} parent=1 // pred_region
      _
    $region43: #{gelu.1} parent=1 // pred_fallthru
      _

</llo_original>
